<compile_context>
chip_gen: v5e
topology: v5e:2x2
jax: 0.10.0
libtpu: 0.0.40
codegen_flags: <defaults>
</compile_context>

<pallas_src>
import functools

import jax
import jax.numpy as jnp
from jax.experimental import pallas as pl
from jax.experimental.pallas import tpu as pltpu

LN_EPS = 1e-5       # nn.LayerNorm default eps
NEG_SLOPE = 0.1     # nn.LeakyReLU(negative_slope=0.1) in the module


def _round_up(x, m):
    return (x + m - 1) // m * m


def mlp_kernel(matmul_dtype, x_ref,
               w1, b1, w2, b2, w3, b3, w4, b4,
               o_ref):
    """(dense -> leaky -> layernorm) x2, dense -> leaky, dense.

    Biases and LayerNorm gamma/beta are pre-folded into (w, b) on the host, so
    each layer is one MXU matmul (bf16 operands, f32 accumulation) plus cheap
    f32 elementwise work. Everything is row-local, so ragged-batch garbage rows
    never contaminate valid rows.
    """
    def dense(h, w, b):
        return jnp.dot(h.astype(matmul_dtype), w[...],
                       preferred_element_type=jnp.float32) + b[...]

    def leaky(h):
        return jnp.where(h > 0, h, NEG_SLOPE * h)

    def layernorm(h):  # affine already folded into the next layer's weights
        mu = jnp.mean(h, axis=-1, keepdims=True)
        var = jnp.mean(jnp.square(h - mu), axis=-1, keepdims=True)
        return (h - mu) * jax.lax.rsqrt(var + LN_EPS)

    h = layernorm(leaky(dense(x_ref[...], w1, b1)))
    h = layernorm(leaky(dense(h, w2, b2)))
    h = leaky(dense(h, w3, b3))
    o_ref[...] = dense(h, w4, b4).astype(o_ref.dtype)


def make_module_params(key, input_size, output_size, hid=64, hid2=32, hid3=64):
    """Deterministic init mirroring the PyTorch module's defaults.

    nn.Linear: U(-1/sqrt(fan_in), 1/sqrt(fan_in)) for weight & bias (torch layout
    (out, in)); extra fcXX_b parameters = 0; LayerNorm gamma=1, beta=0.
    """
    def linear(k, fan_in, fan_out):
        kw, kb = jax.random.split(k)
        bound = 1.0 / float(fan_in) ** 0.5
        w = jax.random.uniform(kw, (fan_out, fan_in), jnp.float32, -bound, bound)
        b = jax.random.uniform(kb, (fan_out,), jnp.float32, -bound, bound)
        return w, b

    k = jax.random.split(key, 4)
    p = {}
    p["fc11_w"], p["fc11_bias"] = linear(k[0], input_size, hid)
    p["fc11_b"] = jnp.zeros((hid,), jnp.float32)
    p["ln1_g"], p["ln1_b"] = jnp.ones((hid,), jnp.float32), jnp.zeros((hid,), jnp.float32)

    p["fc12_w"], p["fc12_bias"] = linear(k[1], hid, hid2)
    p["fc12_b"] = jnp.zeros((hid2,), jnp.float32)
    p["ln3_g"], p["ln3_b"] = jnp.ones((hid2,), jnp.float32), jnp.zeros((hid2,), jnp.float32)

    p["fc13_w"], p["fc13_bias"] = linear(k[2], hid2, hid3)
    p["fc13_b"] = jnp.zeros((hid3,), jnp.float32)

    p["fc14_w"], p["fc14_bias"] = linear(k[3], hid3, output_size)
    p["fc14_b"] = jnp.zeros((output_size,), jnp.float32)
    return p


def fold_params(p, *, matmul_dtype=jnp.bfloat16):
    """Fold the module's parameters into 4 (W, b) pairs for the kernel.

    * Linear bias + extra fcXX_b bias -> single bias per layer.
    * Eval-mode LayerNorm affine:  (norm*g + be) @ W  ==  norm @ (g[:,None]*W) + be@W,
      so layer_norm1 / layer_norm3 gamma/beta fold into fc12 / fc13.
    * Weights are transposed to (in, out) and cast to the matmul dtype; biases stay f32.
    * No output padding: the kernel writes the exact output width.
    """
    w1 = p["fc11_w"].T
    b1 = p["fc11_bias"] + p["fc11_b"]

    w2 = p["ln1_g"][:, None] * p["fc12_w"].T
    b2 = p["ln1_b"] @ p["fc12_w"].T + p["fc12_bias"] + p["fc12_b"]

    w3 = p["ln3_g"][:, None] * p["fc13_w"].T
    b3 = p["ln3_b"] @ p["fc13_w"].T + p["fc13_bias"] + p["fc13_b"]

    w4 = p["fc14_w"].T
    b4 = p["fc14_bias"] + p["fc14_b"]

    prep_w = lambda w: w.astype(matmul_dtype)
    prep_b = lambda b: b.reshape(1, -1).astype(jnp.float32)
    return (prep_w(w1), prep_b(b1), prep_w(w2), prep_b(b2),
            prep_w(w3), prep_b(b3), prep_w(w4), prep_b(b4))


@functools.partial(jax.jit, static_argnames=("tile_b",))
def up_three_layer_forward(x, kernel_params, tile_b=None):
    B, F = x.shape
    out_dim = kernel_params[-1].shape[1]      # exact output width (no padding)
    matmul_dtype = kernel_params[0].dtype

    if tile_b is None:
        # Big tiles amortize per-grid-step overhead; cap at ceil(B/2) (rounded to
        # the f32 sublane of 8) so there are always >=2 grid steps and both v7x
        # TensorCores get a share of the batch. v5e/v6e are unaffected.
        tile_b = min(1024, max(8, _round_up(-(-B // 2), 8)))
    tile_b = max(8, min(tile_b, _round_up(B, 8)))
    assert tile_b % 8 == 0, "tile_b must be a multiple of 8 (f32 sublane)"

    # No batch padding: Pallas handles the ragged last block. Garbage rows are
    # row-local through dense/leaky/LN and their output rows are discarded.
    grid = (pl.cdiv(B, tile_b),)

    def full_block(p):
        # Small parameter tensor: one full block, resident across all grid steps.
        return pl.BlockSpec(p.shape, lambda i: (0,) * p.ndim)

    in_specs = [pl.BlockSpec((tile_b, F), lambda i: (i, 0))]
    in_specs += [full_block(p) for p in kernel_params]

    return pl.pallas_call(
        functools.partial(mlp_kernel, matmul_dtype),
        out_shape=jax.ShapeDtypeStruct((B, out_dim), jnp.float32),
        grid=grid,
        in_specs=in_specs,
        out_specs=pl.BlockSpec((tile_b, out_dim), lambda i: (i, 0)),
        compiler_params=pltpu.CompilerParams(dimension_semantics=("parallel",)),
    )(x, *kernel_params)


def reference_forward(x, p, matmul_dtype=jnp.bfloat16):
    """Pure-JAX mirror of up_three_layer.forward (eval mode), using the same
    bf16-operand / f32-accumulation matmul numerics as the kernel."""
    def dense(h, w_torch, bias):
        return jnp.dot(h.astype(matmul_dtype), w_torch.T.astype(matmul_dtype),
                       preferred_element_type=jnp.float32) + bias

    def leaky(h):
        return jnp.where(h > 0, h, NEG_SLOPE * h)

    def layernorm(h, g, b):
        mu = jnp.mean(h, axis=-1, keepdims=True)
        var = jnp.mean(jnp.square(h - mu), axis=-1, keepdims=True)
        return (h - mu) * jax.lax.rsqrt(var + LN_EPS) * g + b

    f1 = leaky(dense(x, p["fc11_w"], p["fc11_bias"]) + p["fc11_b"])
    f1 = layernorm(f1, p["ln1_g"], p["ln1_b"])
    f2 = leaky(dense(f1, p["fc12_w"], p["fc12_bias"]) + p["fc12_b"])
    f2 = layernorm(f2, p["ln3_g"], p["ln3_b"])
    f3 = leaky(dense(f2, p["fc13_w"], p["fc13_bias"]) + p["fc13_b"])
    return dense(f3, p["fc14_w"], p["fc14_bias"]) + p["fc14_b"]


if __name__ == "__main__":
    input_size, output_size = 16, 8
    hid, hid2, hid3 = 64, 32, 64          # module defaults
    batch = 13                            # not a multiple of 8: exercises the ragged last block

    key = jax.random.PRNGKey(0)
    kx, kp = jax.random.split(key)
    x = jax.random.normal(kx, (batch, input_size), jnp.float32)

    module_params = make_module_params(kp, input_size, output_size, hid, hid2, hid3)
    kernel_params = fold_params(module_params, matmul_dtype=jnp.bfloat16)

    out = up_three_layer_forward(x, kernel_params)
    out = jax.block_until_ready(out)

    ref = reference_forward(x, module_params, matmul_dtype=jnp.bfloat16)
    assert out.shape == (batch, output_size)
    max_diff = float(jnp.max(jnp.abs(out - ref)))
    # Tolerance reflects bf16 matmul operands (f32 accumulation) on both sides.
    assert jnp.allclose(out, ref, atol=1e-3, rtol=1e-3), (
        f"mismatch vs pure-JAX reference, max abs diff = {max_diff}")

    print("KERNEL_OK")
</pallas_src>

<mosaic_0001>
module attributes {stable_mosaic.version = 11 : i64} {
  func.func @mlp_kernel(%arg0: i32, %arg1: memref<8x16xf32, #tpu.memory_space<vmem>>, %arg2: memref<16x64xbf16, #tpu.memory_space<vmem>>, %arg3: memref<1x64xf32, #tpu.memory_space<vmem>>, %arg4: memref<64x32xbf16, #tpu.memory_space<vmem>>, %arg5: memref<1x32xf32, #tpu.memory_space<vmem>>, %arg6: memref<32x64xbf16, #tpu.memory_space<vmem>>, %arg7: memref<1x64xf32, #tpu.memory_space<vmem>>, %arg8: memref<64x8xbf16, #tpu.memory_space<vmem>>, %arg9: memref<1x8xf32, #tpu.memory_space<vmem>>, %arg10: memref<8x8xf32, #tpu.memory_space<vmem>>) attributes {dimension_semantics = [#tpu.dimension_semantics<parallel>], iteration_bounds = array<i64: 2>, scalar_prefetch = 0 : i64, scratch_operands = 0 : i64, tpu.core_type = #tpu.core_type<tc>, window_params = [{transform_indices = @transform_0, window_bounds = array<i64: 8, 16>}, {pipeline_mode = #tpu.pipeline_mode<synchronous>, transform_indices = @transform_1, window_bounds = array<i64: 16, 64>}, {pipeline_mode = #tpu.pipeline_mode<synchronous>, transform_indices = @transform_2, window_bounds = array<i64: 1, 64>}, {pipeline_mode = #tpu.pipeline_mode<synchronous>, transform_indices = @transform_3, window_bounds = array<i64: 64, 32>}, {pipeline_mode = #tpu.pipeline_mode<synchronous>, transform_indices = @transform_4, window_bounds = array<i64: 1, 32>}, {pipeline_mode = #tpu.pipeline_mode<synchronous>, transform_indices = @transform_5, window_bounds = array<i64: 32, 64>}, {pipeline_mode = #tpu.pipeline_mode<synchronous>, transform_indices = @transform_6, window_bounds = array<i64: 1, 64>}, {pipeline_mode = #tpu.pipeline_mode<synchronous>, transform_indices = @transform_7, window_bounds = array<i64: 64, 8>}, {pipeline_mode = #tpu.pipeline_mode<synchronous>, transform_indices = @transform_8, window_bounds = array<i64: 1, 8>}, {transform_indices = @transform_9, window_bounds = array<i64: 8, 8>}]} {
    %c0 = arith.constant 0 : index
    %c0_0 = arith.constant 0 : index
    %0 = vector.load %arg1[%c0, %c0_0] : memref<8x16xf32, #tpu.memory_space<vmem>>, vector<8x16xf32>
    %1 = arith.truncf %0 : vector<8x16xf32> to vector<8x16xbf16>
    %c0_1 = arith.constant 0 : index
    %c0_2 = arith.constant 0 : index
    %2 = vector.load %arg2[%c0_1, %c0_2] : memref<16x64xbf16, #tpu.memory_space<vmem>>, vector<16x64xbf16>
    %cst = arith.constant dense<0.000000e+00> : vector<8x64xf32>
    %3 = tpu.matmul %1, %2, %cst {dimension_numbers = #tpu.dot_dimension_numbers<[1], [0], [0], [1], [0, 0, 1, 1], [], []>} : vector<8x16xbf16>, vector<16x64xbf16>, vector<8x64xf32> -> vector<8x64xf32>
    %c0_3 = arith.constant 0 : index
    %c0_4 = arith.constant 0 : index
    %4 = vector.load %arg3[%c0_3, %c0_4] : memref<1x64xf32, #tpu.memory_space<vmem>>, vector<1x64xf32>
    %5 = vector.broadcast %4 : vector<1x64xf32> to vector<8x64xf32>
    %6 = arith.addf %3, %5 : vector<8x64xf32>
    %cst_5 = arith.constant 0.000000e+00 : f32
    %7 = vector.broadcast %cst_5 : f32 to vector<8x64xf32>
    %8 = arith.cmpf ogt, %6, %7 : vector<8x64xf32>
    %cst_6 = arith.constant 1.000000e-01 : f32
    %9 = vector.broadcast %cst_6 : f32 to vector<8x64xf32>
    %10 = arith.mulf %9, %6 : vector<8x64xf32>
    %11 = arith.select %8, %6, %10 : vector<8x64xi1>, vector<8x64xf32>
    %cst_7 = arith.constant dense<0.000000e+00> : vector<8xf32>
    %12 = vector.multi_reduction <add>, %11, %cst_7 [1] : vector<8x64xf32> to vector<8xf32>
    %13 = vector.shape_cast %12 : vector<8xf32> to vector<8x1xf32>
    %cst_8 = arith.constant 6.400000e+01 : f32
    %14 = vector.broadcast %cst_8 : f32 to vector<8x1xf32>
    %15 = arith.divf %13, %14 : vector<8x1xf32>
    %16 = vector.broadcast %15 : vector<8x1xf32> to vector<8x64xf32>
    %17 = arith.subf %11, %16 : vector<8x64xf32>
    %18 = arith.mulf %17, %17 : vector<8x64xf32>
    %cst_9 = arith.constant dense<0.000000e+00> : vector<8xf32>
    %19 = vector.multi_reduction <add>, %18, %cst_9 [1] : vector<8x64xf32> to vector<8xf32>
    %20 = vector.shape_cast %19 : vector<8xf32> to vector<8x1xf32>
    %cst_10 = arith.constant 6.400000e+01 : f32
    %21 = vector.broadcast %cst_10 : f32 to vector<8x1xf32>
    %22 = arith.divf %20, %21 : vector<8x1xf32>
    %23 = vector.broadcast %15 : vector<8x1xf32> to vector<8x64xf32>
    %24 = arith.subf %11, %23 : vector<8x64xf32>
    %cst_11 = arith.constant 9.99999974E-6 : f32
    %25 = vector.broadcast %cst_11 : f32 to vector<8x1xf32>
    %26 = arith.addf %22, %25 : vector<8x1xf32>
    %27 = math.rsqrt %26 : vector<8x1xf32>
    %28 = vector.broadcast %27 : vector<8x1xf32> to vector<8x64xf32>
    %29 = arith.mulf %24, %28 : vector<8x64xf32>
    %30 = arith.truncf %29 : vector<8x64xf32> to vector<8x64xbf16>
    %c0_12 = arith.constant 0 : index
    %c0_13 = arith.constant 0 : index
    %31 = vector.load %arg4[%c0_12, %c0_13] : memref<64x32xbf16, #tpu.memory_space<vmem>>, vector<64x32xbf16>
    %cst_14 = arith.constant dense<0.000000e+00> : vector<8x32xf32>
    %32 = tpu.matmul %30, %31, %cst_14 {dimension_numbers = #tpu.dot_dimension_numbers<[1], [0], [0], [1], [0, 0, 1, 1], [], []>} : vector<8x64xbf16>, vector<64x32xbf16>, vector<8x32xf32> -> vector<8x32xf32>
    %c0_15 = arith.constant 0 : index
    %c0_16 = arith.constant 0 : index
    %33 = vector.load %arg5[%c0_15, %c0_16] : memref<1x32xf32, #tpu.memory_space<vmem>>, vector<1x32xf32>
    %34 = vector.broadcast %33 : vector<1x32xf32> to vector<8x32xf32>
    %35 = arith.addf %32, %34 : vector<8x32xf32>
    %cst_17 = arith.constant 0.000000e+00 : f32
    %36 = vector.broadcast %cst_17 : f32 to vector<8x32xf32>
    %37 = arith.cmpf ogt, %35, %36 : vector<8x32xf32>
    %cst_18 = arith.constant 1.000000e-01 : f32
    %38 = vector.broadcast %cst_18 : f32 to vector<8x32xf32>
    %39 = arith.mulf %38, %35 : vector<8x32xf32>
    %40 = arith.select %37, %35, %39 : vector<8x32xi1>, vector<8x32xf32>
    %cst_19 = arith.constant dense<0.000000e+00> : vector<8xf32>
    %41 = vector.multi_reduction <add>, %40, %cst_19 [1] : vector<8x32xf32> to vector<8xf32>
    %42 = vector.shape_cast %41 : vector<8xf32> to vector<8x1xf32>
    %cst_20 = arith.constant 3.200000e+01 : f32
    %43 = vector.broadcast %cst_20 : f32 to vector<8x1xf32>
    %44 = arith.divf %42, %43 : vector<8x1xf32>
    %45 = vector.broadcast %44 : vector<8x1xf32> to vector<8x32xf32>
    %46 = arith.subf %40, %45 : vector<8x32xf32>
    %47 = arith.mulf %46, %46 : vector<8x32xf32>
    %cst_21 = arith.constant dense<0.000000e+00> : vector<8xf32>
    %48 = vector.multi_reduction <add>, %47, %cst_21 [1] : vector<8x32xf32> to vector<8xf32>
    %49 = vector.shape_cast %48 : vector<8xf32> to vector<8x1xf32>
    %cst_22 = arith.constant 3.200000e+01 : f32
    %50 = vector.broadcast %cst_22 : f32 to vector<8x1xf32>
    %51 = arith.divf %49, %50 : vector<8x1xf32>
    %52 = vector.broadcast %44 : vector<8x1xf32> to vector<8x32xf32>
    %53 = arith.subf %40, %52 : vector<8x32xf32>
    %cst_23 = arith.constant 9.99999974E-6 : f32
    %54 = vector.broadcast %cst_23 : f32 to vector<8x1xf32>
    %55 = arith.addf %51, %54 : vector<8x1xf32>
    %56 = math.rsqrt %55 : vector<8x1xf32>
    %57 = vector.broadcast %56 : vector<8x1xf32> to vector<8x32xf32>
    %58 = arith.mulf %53, %57 : vector<8x32xf32>
    %59 = arith.truncf %58 : vector<8x32xf32> to vector<8x32xbf16>
    %c0_24 = arith.constant 0 : index
    %c0_25 = arith.constant 0 : index
    %60 = vector.load %arg6[%c0_24, %c0_25] : memref<32x64xbf16, #tpu.memory_space<vmem>>, vector<32x64xbf16>
    %cst_26 = arith.constant dense<0.000000e+00> : vector<8x64xf32>
    %61 = tpu.matmul %59, %60, %cst_26 {dimension_numbers = #tpu.dot_dimension_numbers<[1], [0], [0], [1], [0, 0, 1, 1], [], []>} : vector<8x32xbf16>, vector<32x64xbf16>, vector<8x64xf32> -> vector<8x64xf32>
    %c0_27 = arith.constant 0 : index
    %c0_28 = arith.constant 0 : index
    %62 = vector.load %arg7[%c0_27, %c0_28] : memref<1x64xf32, #tpu.memory_space<vmem>>, vector<1x64xf32>
    %63 = vector.broadcast %62 : vector<1x64xf32> to vector<8x64xf32>
    %64 = arith.addf %61, %63 : vector<8x64xf32>
    %cst_29 = arith.constant 0.000000e+00 : f32
    %65 = vector.broadcast %cst_29 : f32 to vector<8x64xf32>
    %66 = arith.cmpf ogt, %64, %65 : vector<8x64xf32>
    %cst_30 = arith.constant 1.000000e-01 : f32
    %67 = vector.broadcast %cst_30 : f32 to vector<8x64xf32>
    %68 = arith.mulf %67, %64 : vector<8x64xf32>
    %69 = arith.select %66, %64, %68 : vector<8x64xi1>, vector<8x64xf32>
    %70 = arith.truncf %69 : vector<8x64xf32> to vector<8x64xbf16>
    %c0_31 = arith.constant 0 : index
    %c0_32 = arith.constant 0 : index
    %71 = vector.load %arg8[%c0_31, %c0_32] : memref<64x8xbf16, #tpu.memory_space<vmem>>, vector<64x8xbf16>
    %cst_33 = arith.constant dense<0.000000e+00> : vector<8x8xf32>
    %72 = tpu.matmul %70, %71, %cst_33 {dimension_numbers = #tpu.dot_dimension_numbers<[1], [0], [0], [1], [0, 0, 1, 1], [], []>} : vector<8x64xbf16>, vector<64x8xbf16>, vector<8x8xf32> -> vector<8x8xf32>
    %c0_34 = arith.constant 0 : index
    %c0_35 = arith.constant 0 : index
    %73 = vector.load %arg9[%c0_34, %c0_35] : memref<1x8xf32, #tpu.memory_space<vmem>>, vector<1x8xf32>
    %74 = vector.broadcast %73 : vector<1x8xf32> to vector<8x8xf32>
    %75 = arith.addf %72, %74 : vector<8x8xf32>
    %c0_36 = arith.constant 0 : index
    %c0_37 = arith.constant 0 : index
    %76 = vector.load %arg10[%c0_36, %c0_37] : memref<8x8xf32, #tpu.memory_space<vmem>>, vector<8x8xf32>
    tpu.vector_store %arg10[%c0_36, %c0_37], %75 {strides = array<i32>} : memref<8x8xf32, #tpu.memory_space<vmem>>, vector<8x8xf32>,
    return
  }
  func.func @transform_0(%arg0: i32) -> (i32, i32) {
    %c0_i32 = arith.constant 0 : i32
    %c0_i32_0 = arith.constant 0 : i32
    return %arg0, %c0_i32 : i32, i32
  }
  func.func @transform_1(%arg0: i32) -> (i32, i32) {
    %c0_i32 = arith.constant 0 : i32
    %c0_i32_0 = arith.constant 0 : i32
    %c0_i32_1 = arith.constant 0 : i32
    return %c0_i32, %c0_i32_0 : i32, i32
  }
  func.func @transform_2(%arg0: i32) -> (i32, i32) {
    %c0_i32 = arith.constant 0 : i32
    %c0_i32_0 = arith.constant 0 : i32
    %c0_i32_1 = arith.constant 0 : i32
    return %c0_i32, %c0_i32_0 : i32, i32
  }
  func.func @transform_3(%arg0: i32) -> (i32, i32) {
    %c0_i32 = arith.constant 0 : i32
    %c0_i32_0 = arith.constant 0 : i32
    %c0_i32_1 = arith.constant 0 : i32
    return %c0_i32, %c0_i32_0 : i32, i32
  }
  func.func @transform_4(%arg0: i32) -> (i32, i32) {
    %c0_i32 = arith.constant 0 : i32
    %c0_i32_0 = arith.constant 0 : i32
    %c0_i32_1 = arith.constant 0 : i32
    return %c0_i32, %c0_i32_0 : i32, i32
  }
  func.func @transform_5(%arg0: i32) -> (i32, i32) {
    %c0_i32 = arith.constant 0 : i32
    %c0_i32_0 = arith.constant 0 : i32
    %c0_i32_1 = arith.constant 0 : i32
    return %c0_i32, %c0_i32_0 : i32, i32
  }
  func.func @transform_6(%arg0: i32) -> (i32, i32) {
    %c0_i32 = arith.constant 0 : i32
    %c0_i32_0 = arith.constant 0 : i32
    %c0_i32_1 = arith.constant 0 : i32
    return %c0_i32, %c0_i32_0 : i32, i32
  }
  func.func @transform_7(%arg0: i32) -> (i32, i32) {
    %c0_i32 = arith.constant 0 : i32
    %c0_i32_0 = arith.constant 0 : i32
    %c0_i32_1 = arith.constant 0 : i32
    return %c0_i32, %c0_i32_0 : i32, i32
  }
  func.func @transform_8(%arg0: i32) -> (i32, i32) {
    %c0_i32 = arith.constant 0 : i32
    %c0_i32_0 = arith.constant 0 : i32
    %c0_i32_1 = arith.constant 0 : i32
    return %c0_i32, %c0_i32_0 : i32, i32
  }
  func.func @transform_9(%arg0: i32) -> (i32, i32) {
    %c0_i32 = arith.constant 0 : i32
    %c0_i32_0 = arith.constant 0 : i32
    return %arg0, %c0_i32 : i32, i32
  }
}

</mosaic_0001>

<llo_original>
// kernel: up_three_layer_forward.1
$region0: #{up_three_layer_forward.1}
  #allocation0 [shape = 'u32[]', space=smem, size = 0x4, offset = 0x4, fixed_abs, tag = 'smem constant byte address 0x4 - core index']
  #allocation1 [shape = 'u32[72,128]{1,0:T(1,128)}', space=vmem, size = 0x9000, scoped, tag = 'internal scratch']
  %s0 = inlined_call_operand.vmem [shape: f32[13,16], index: 0, kind: input, shape index: {}]
  %s1 = inlined_call_operand.vmem [shape: bf16[16,64], index: 1, kind: input, shape index: {}]
  %s2 = inlined_call_operand.vmem [shape: f32[1,64], index: 2, kind: input, shape index: {}]
  %s3 = inlined_call_operand.vmem [shape: bf16[64,32], index: 3, kind: input, shape index: {}]
  %s4 = inlined_call_operand.vmem [shape: f32[1,32], index: 4, kind: input, shape index: {}]
  %s5 = inlined_call_operand.vmem [shape: bf16[32,64], index: 5, kind: input, shape index: {}]
  %s6 = inlined_call_operand.vmem [shape: f32[1,64], index: 6, kind: input, shape index: {}]
  %s7 = inlined_call_operand.vmem [shape: bf16[64,8], index: 7, kind: input, shape index: {}]
  %s8 = inlined_call_operand.vmem [shape: f32[1,8], index: 8, kind: input, shape index: {}]
  %s9 = inlined_call_operand.vmem [shape: f32[13,8], index: 9, kind: output, shape index: {}]
  %s10 = sld [smem:[#allocation0]]
  $region69: #{up_three_layer_forward.1} parent=0
    _
  %s12 = ssub.s32 1, %s10
  %s13 = scalar_select 0, %s12, %s10
  loop: start=0, step=1, limit=4
  $region2: #{up_three_layer_forward.1} parent=0 // loop_pre_header
    _
  $region3: #{up_three_layer_forward.1} parent=0 // loop_header
    %s15 = sphi 0, %s19
    %p16 = scmp.ge.s32.totalorder %s15, 4
    %s25 = sphi 0, %s27
    %s28 = sphi 0, %s25
    %s29 = sphi 0, %s28
    %s45 = sphi 0, %s29
    %s49 = sphi 0, %s49
    %s51 = sphi 0, %s49
    %s52 = sphi 0, %s51
    %s66 = sphi 0, %s52
    %s70 = sphi 0, %s70
    %s72 = sphi 0, %s70
    %s73 = sphi 0, %s72
    %s87 = sphi 0, %s73
    %s91 = sphi 0, %s91
    %s93 = sphi 0, %s91
    %s94 = sphi 0, %s93
    %s108 = sphi 0, %s94
    %s112 = sphi 0, %s112
    %s114 = sphi 0, %s112
    %s115 = sphi 0, %s114
    %s129 = sphi 0, %s115
    %s133 = sphi 0, %s133
    %s135 = sphi 0, %s133
    %s136 = sphi 0, %s135
    %s150 = sphi 0, %s136
    %s154 = sphi 0, %s154
    %s156 = sphi 0, %s154
    %s157 = sphi 0, %s156
    %s171 = sphi 0, %s157
    %s175 = sphi 0, %s175
    %s177 = sphi 0, %s175
    %s178 = sphi 0, %s177
    %s192 = sphi 0, %s178
    %s196 = sphi 0, %s196
    %s198 = sphi 0, %s196
    %s199 = sphi 0, %s198
    %s213 = sphi 0, %s199
    %s219 = sphi 0, %s221
    %s222 = sphi 0, %s219
    %s223 = sphi 0, %s222
    %s239 = sphi 0, %s223
  $region4: #{up_three_layer_forward.1} parent=0 // loop_header_branch
    %18 = sbr.rel (%p16) target = $region8
  $region5: #{up_three_layer_forward.1} parent=0 // loop_body
    %s20 = ssub.s32 %s15, 1
    %s21 = ssub.s32 %s15, 2
    %s22 = sadd.s32 %s15, 1
    %s23 = ssub.s32 %s15, %s22
    %p24 = scmp.eq.s32.totalorder %s23, 0
    %s26 = sadd.s32 %s25, 1
    %s27 = scalar_select %p24, %s25, %s26
    %p30 = pneg %p24
    %p31 = scmp.eq.s32.totalorder %s15, 1
    %p32 = por %p30, %p31
    %p33 = scmp.ne.s32.totalorder %s25, %s28
    %p34 = scmp.eq.s32.totalorder %s15, 0
    %p35 = por %p33, %p34
    %p36 = scmp.ne.s32.totalorder %s25, %s28
    %p37 = scmp.eq.s32.totalorder %s20, 1
    %p38 = por %p36, %p37
    %p39 = scmp.ne.s32.totalorder %s28, %s29
    %p40 = scmp.eq.s32.totalorder %s20, 0
    %p41 = por %p39, %p40
    %p42 = scmp.ne.s32.totalorder %s28, %s29
    %p43 = scmp.eq.s32.totalorder %s21, 1
    %p44 = por %p42, %p43
    %p46 = scmp.ne.s32.totalorder %s29, %s45
    %p47 = scmp.eq.s32.totalorder %s21, 0
    %p48 = por %p46, %p47
    %s50 = sadd.s32 %s49, 1
    %p53 = scmp.eq.s32.totalorder %s15, 1
    %p54 = scmp.ne.s32.totalorder %s49, %s51
    %p55 = scmp.eq.s32.totalorder %s15, 0
    %p56 = por %p54, %p55
    %p57 = scmp.ne.s32.totalorder %s49, %s51
    %p58 = scmp.eq.s32.totalorder %s20, 1
    %p59 = por %p57, %p58
    %p60 = scmp.ne.s32.totalorder %s51, %s52
    %p61 = scmp.eq.s32.totalorder %s20, 0
    %p62 = por %p60, %p61
    %p63 = scmp.ne.s32.totalorder %s51, %s52
    %p64 = scmp.eq.s32.totalorder %s21, 1
    %p65 = por %p63, %p64
    %p67 = scmp.ne.s32.totalorder %s52, %s66
    %p68 = scmp.eq.s32.totalorder %s21, 0
    %p69 = por %p67, %p68
    %s71 = sadd.s32 %s70, 1
    %p74 = scmp.eq.s32.totalorder %s15, 1
    %p75 = scmp.ne.s32.totalorder %s70, %s72
    %p76 = scmp.eq.s32.totalorder %s15, 0
    %p77 = por %p75, %p76
    %p78 = scmp.ne.s32.totalorder %s70, %s72
    %p79 = scmp.eq.s32.totalorder %s20, 1
    %p80 = por %p78, %p79
    %p81 = scmp.ne.s32.totalorder %s72, %s73
    %p82 = scmp.eq.s32.totalorder %s20, 0
    %p83 = por %p81, %p82
    %p84 = scmp.ne.s32.totalorder %s72, %s73
    %p85 = scmp.eq.s32.totalorder %s21, 1
    %p86 = por %p84, %p85
    %p88 = scmp.ne.s32.totalorder %s73, %s87
    %p89 = scmp.eq.s32.totalorder %s21, 0
    %p90 = por %p88, %p89
    %s92 = sadd.s32 %s91, 1
    %p95 = scmp.eq.s32.totalorder %s15, 1
    %p96 = scmp.ne.s32.totalorder %s91, %s93
    %p97 = scmp.eq.s32.totalorder %s15, 0
    %p98 = por %p96, %p97
    %p99 = scmp.ne.s32.totalorder %s91, %s93
    %p100 = scmp.eq.s32.totalorder %s20, 1
    %p101 = por %p99, %p100
    %p102 = scmp.ne.s32.totalorder %s93, %s94
    %p103 = scmp.eq.s32.totalorder %s20, 0
    %p104 = por %p102, %p103
    %p105 = scmp.ne.s32.totalorder %s93, %s94
    %p106 = scmp.eq.s32.totalorder %s21, 1
    %p107 = por %p105, %p106
    %p109 = scmp.ne.s32.totalorder %s94, %s108
    %p110 = scmp.eq.s32.totalorder %s21, 0
    %p111 = por %p109, %p110
    %s113 = sadd.s32 %s112, 1
    %p116 = scmp.eq.s32.totalorder %s15, 1
    %p117 = scmp.ne.s32.totalorder %s112, %s114
    %p118 = scmp.eq.s32.totalorder %s15, 0
    %p119 = por %p117, %p118
    %p120 = scmp.ne.s32.totalorder %s112, %s114
    %p121 = scmp.eq.s32.totalorder %s20, 1
    %p122 = por %p120, %p121
    %p123 = scmp.ne.s32.totalorder %s114, %s115
    %p124 = scmp.eq.s32.totalorder %s20, 0
    %p125 = por %p123, %p124
    %p126 = scmp.ne.s32.totalorder %s114, %s115
    %p127 = scmp.eq.s32.totalorder %s21, 1
    %p128 = por %p126, %p127
    %p130 = scmp.ne.s32.totalorder %s115, %s129
    %p131 = scmp.eq.s32.totalorder %s21, 0
    %p132 = por %p130, %p131
    %s134 = sadd.s32 %s133, 1
    %p137 = scmp.eq.s32.totalorder %s15, 1
    %p138 = scmp.ne.s32.totalorder %s133, %s135
    %p139 = scmp.eq.s32.totalorder %s15, 0
    %p140 = por %p138, %p139
    %p141 = scmp.ne.s32.totalorder %s133, %s135
    %p142 = scmp.eq.s32.totalorder %s20, 1
    %p143 = por %p141, %p142
    %p144 = scmp.ne.s32.totalorder %s135, %s136
    %p145 = scmp.eq.s32.totalorder %s20, 0
    %p146 = por %p144, %p145
    %p147 = scmp.ne.s32.totalorder %s135, %s136
    %p148 = scmp.eq.s32.totalorder %s21, 1
    %p149 = por %p147, %p148
    %p151 = scmp.ne.s32.totalorder %s136, %s150
    %p152 = scmp.eq.s32.totalorder %s21, 0
    %p153 = por %p151, %p152
    %s155 = sadd.s32 %s154, 1
    %p158 = scmp.eq.s32.totalorder %s15, 1
    %p159 = scmp.ne.s32.totalorder %s154, %s156
    %p160 = scmp.eq.s32.totalorder %s15, 0
    %p161 = por %p159, %p160
    %p162 = scmp.ne.s32.totalorder %s154, %s156
    %p163 = scmp.eq.s32.totalorder %s20, 1
    %p164 = por %p162, %p163
    %p165 = scmp.ne.s32.totalorder %s156, %s157
    %p166 = scmp.eq.s32.totalorder %s20, 0
    %p167 = por %p165, %p166
    %p168 = scmp.ne.s32.totalorder %s156, %s157
    %p169 = scmp.eq.s32.totalorder %s21, 1
    %p170 = por %p168, %p169
    %p172 = scmp.ne.s32.totalorder %s157, %s171
    %p173 = scmp.eq.s32.totalorder %s21, 0
    %p174 = por %p172, %p173
    %s176 = sadd.s32 %s175, 1
    %p179 = scmp.eq.s32.totalorder %s15, 1
    %p180 = scmp.ne.s32.totalorder %s175, %s177
    %p181 = scmp.eq.s32.totalorder %s15, 0
    %p182 = por %p180, %p181
    %p183 = scmp.ne.s32.totalorder %s175, %s177
    %p184 = scmp.eq.s32.totalorder %s20, 1
    %p185 = por %p183, %p184
    %p186 = scmp.ne.s32.totalorder %s177, %s178
    %p187 = scmp.eq.s32.totalorder %s20, 0
    %p188 = por %p186, %p187
    %p189 = scmp.ne.s32.totalorder %s177, %s178
    %p190 = scmp.eq.s32.totalorder %s21, 1
    %p191 = por %p189, %p190
    %p193 = scmp.ne.s32.totalorder %s178, %s192
    %p194 = scmp.eq.s32.totalorder %s21, 0
    %p195 = por %p193, %p194
    %s197 = sadd.s32 %s196, 1
    %p200 = scmp.eq.s32.totalorder %s15, 1
    %p201 = scmp.ne.s32.totalorder %s196, %s198
    %p202 = scmp.eq.s32.totalorder %s15, 0
    %p203 = por %p201, %p202
    %p204 = scmp.ne.s32.totalorder %s196, %s198
    %p205 = scmp.eq.s32.totalorder %s20, 1
    %p206 = por %p204, %p205
    %p207 = scmp.ne.s32.totalorder %s198, %s199
    %p208 = scmp.eq.s32.totalorder %s20, 0
    %p209 = por %p207, %p208
    %p210 = scmp.ne.s32.totalorder %s198, %s199
    %p211 = scmp.eq.s32.totalorder %s21, 1
    %p212 = por %p210, %p211
    %p214 = scmp.ne.s32.totalorder %s199, %s213
    %p215 = scmp.eq.s32.totalorder %s21, 0
    %p216 = por %p214, %p215
    %s217 = ssub.s32 %s15, %s22
    %p218 = scmp.eq.s32.totalorder %s217, 0
    %s220 = sadd.s32 %s219, 1
    %s221 = scalar_select %p218, %s219, %s220
    %p224 = pneg %p218
    %p225 = scmp.eq.s32.totalorder %s15, 1
    %p226 = por %p224, %p225
    %p227 = scmp.ne.s32.totalorder %s219, %s222
    %p228 = scmp.eq.s32.totalorder %s15, 0
    %p229 = por %p227, %p228
    %p230 = scmp.ne.s32.totalorder %s219, %s222
    %p231 = scmp.eq.s32.totalorder %s20, 1
    %p232 = por %p230, %p231
    %p233 = scmp.ne.s32.totalorder %s222, %s223
    %p234 = scmp.eq.s32.totalorder %s20, 0
    %p235 = por %p233, %p234
    %p236 = scmp.ne.s32.totalorder %s222, %s223
    %p237 = scmp.eq.s32.totalorder %s21, 1
    %p238 = por %p236, %p237
    %p240 = scmp.ne.s32.totalorder %s223, %s239
    %p241 = scmp.eq.s32.totalorder %s21, 0
    %p242 = por %p240, %p241
    %p243 = scmp.le.s32.totalorder 1, %s15
    %p244 = scmp.lt.s32.totalorder %s15, 3
    %p245 = pnand %p243, %p244
    %p246 = pneg %p245
    // Predicated region
    $region9: #{up_three_layer_forward.1} parent=5 // pred_check
      _
    $region10: #{up_three_layer_forward.1} parent=5 // pred_check_branch
      %248 = sbr.rel (%p245) target = $region12
    $region11: #{up_three_layer_forward.1} parent=5 // pred_region
      %s249 = ssub.s32 %s15, 1
      // Predicated region
      $region13: #{up_three_layer_forward.1} parent=11 // pred_check
        %p250 = pneg %p62
      $region14: #{up_three_layer_forward.1} parent=11 // pred_check_branch
        %252 = sbr.rel (%p250) target = $region16
      $region15: #{up_three_layer_forward.1} parent=11 // pred_region
        _
      $region16: #{up_three_layer_forward.1} parent=11 // pred_fallthru
        _
      // Predicated region
      $region17: #{up_three_layer_forward.1} parent=11 // pred_check
        %p253 = pneg %p83
      $region18: #{up_three_layer_forward.1} parent=11 // pred_check_branch
        %255 = sbr.rel (%p253) target = $region20
      $region19: #{up_three_layer_forward.1} parent=11 // pred_region
        _
      $region20: #{up_three_layer_forward.1} parent=11 // pred_fallthru
        _
      // Predicated region
      $region21: #{up_three_layer_forward.1} parent=11 // pred_check
        %p256 = pneg %p104
      $region22: #{up_three_layer_forward.1} parent=11 // pred_check_branch
        %258 = sbr.rel (%p256) target = $region24
      $region23: #{up_three_layer_forward.1} parent=11 // pred_region
        _
      $region24: #{up_three_layer_forward.1} parent=11 // pred_fallthru
        _
      // Predicated region
      $region25: #{up_three_layer_forward.1} parent=11 // pred_check
        %p259 = pneg %p125
      $region26: #{up_three_layer_forward.1} parent=11 // pred_check_branch
        %261 = sbr.rel (%p259) target = $region28
      $region27: #{up_three_layer_forward.1} parent=11 // pred_region
        _
      $region28: #{up_three_layer_forward.1} parent=11 // pred_fallthru
        _
      // Predicated region
      $region29: #{up_three_layer_forward.1} parent=11 // pred_check
        %p262 = pneg %p146
      $region30: #{up_three_layer_forward.1} parent=11 // pred_check_branch
        %264 = sbr.rel (%p262) target = $region32
      $region31: #{up_three_layer_forward.1} parent=11 // pred_region
        _
      $region32: #{up_three_layer_forward.1} parent=11 // pred_fallthru
        _
      // Predicated region
      $region33: #{up_three_layer_forward.1} parent=11 // pred_check
        %p265 = pneg %p167
      $region34: #{up_three_layer_forward.1} parent=11 // pred_check_branch
        %267 = sbr.rel (%p265) target = $region36
      $region35: #{up_three_layer_forward.1} parent=11 // pred_region
        _
      $region36: #{up_three_layer_forward.1} parent=11 // pred_fallthru
        _
      // Predicated region
      $region37: #{up_three_layer_forward.1} parent=11 // pred_check
        %p268 = pneg %p188
      $region38: #{up_three_layer_forward.1} parent=11 // pred_check_branch
        %270 = sbr.rel (%p268) target = $region40
      $region39: #{up_three_layer_forward.1} parent=11 // pred_region
        _
      $region40: #{up_three_layer_forward.1} parent=11 // pred_fallthru
        _
      // Predicated region
      $region41: #{up_three_layer_forward.1} parent=11 // pred_check
        %p271 = pneg %p209
      $region42: #{up_three_layer_forward.1} parent=11 // pred_check_branch
        %273 = sbr.rel (%p271) target = $region44
      $region43: #{up_three_layer_forward.1} parent=11 // pred_region
        _
      $region44: #{up_three_layer_forward.1} parent=11 // pred_fallthru
        _
    $region12: #{up_three_layer_forward.1} parent=5 // pred_fallthru
      _
    %p274 = scmp.lt.s32.totalorder %s15, 2
    // Predicated region
    $region45: #{up_three_layer_forward.1} parent=5 // pred_check
      %p275 = pneg %p274
    $region46: #{up_three_layer_forward.1} parent=5 // pred_check_branch
      %277 = sbr.rel (%p275) target = $region48
    $region47: #{up_three_layer_forward.1} parent=5 // pred_region
      // Predicated region
      $region49: #{up_three_layer_forward.1} parent=47 // pred_check
        %p278 = pneg %p35
      $region50: #{up_three_layer_forward.1} parent=47 // pred_check_branch
        %280 = sbr.rel (%p278) target = $region52
      $region51: #{up_three_layer_forward.1} parent=47 // pred_region
        %p281 = scmp.lt.s32.totalorder %s15, 1
        %s282 = scalar_select %p281, %s15, 1
        %s283 = smul.addr %s282, 8
        %s284 = scalar_lea.vmem %s0, %s283
      $region52: #{up_three_layer_forward.1} parent=47 // pred_fallthru
        _
    $region48: #{up_three_layer_forward.1} parent=5 // pred_fallthru
      _
    %p285 = scmp.le.s32.totalorder 1, %s15
    %p286 = scmp.lt.s32.totalorder %s15, 3
    %p287 = pnand %p285, %p286
    %p288 = pneg %p287
    // Predicated region
    $region53: #{up_three_layer_forward.1} parent=5 // pred_check
      _
    $region54: #{up_three_layer_forward.1} parent=5 // pred_check_branch
      %290 = sbr.rel (%p287) target = $region56
    $region55: #{up_three_layer_forward.1} parent=5 // pred_region
      %s291 = ssub.s32 %s15, 1
      %p292 = scmp.lt.s32.totalorder %s20, 1
      %s293 = scalar_select %p292, %s20, 1
      %s294 = smul.addr %s293, 8
      %s295 = scalar_lea.vmem %s0, %s294
      %p296 = pneg %p41
      %p297 = pneg %p38
      %p298 = pneg %p62
      %p299 = pneg %p59
      %p300 = pneg %p83
      %p301 = pneg %p80
      %p302 = pneg %p104
      %p303 = pneg %p101
      %p304 = pneg %p125
      %p305 = pneg %p122
      %p306 = pneg %p146
      %p307 = pneg %p143
      %p308 = pneg %p167
      %p309 = pneg %p164
      %p310 = pneg %p188
      %p311 = pneg %p185
      %p312 = pneg %p209
      %p313 = pneg %p206
      %p314 = pneg %p235
      %p315 = pneg %p232
      %p316 = scmp.lt.s32.totalorder %s20, 1
      %s317 = scalar_select %p316, %s20, 1
      %s318 = smul.addr %s317, 8
      %s319 = scalar_lea.vmem %s9, %s318
      %p320 = scmp.lt.s32.totalorder %s20, 1
      %s321 = scalar_select %p320, %s20, 1
      %s322 = smul.addr %s321, 8
      %s323 = scalar_lea.vmem %s0, %s322
      %p324 = scmp.lt.s32.totalorder %s20, 1
      %s325 = scalar_select %p324, %s20, 1
      %s326 = smul.addr %s325, 8
      %s327 = scalar_lea.vmem %s9, %s326
      %v329 = vld [vmem:[%s323] sm:$0xff]
      %v330 = vpack.c.bf16 %v329, %v329
      %v331 = vld [vmem:[%s1] sm:$0xf]
      %v332 = vld [vmem:[%s1 + $0x4] sm:$0xf]
      %v333 = vld [vmem:[%s2] sm:$0x1]
      %v335 = vperm.slane %v333, 0
      %v339 = vunpack.c.l.b16 %v331
      %v340 = vunpack.c.l.b16 %v332
      %v341 = vpack.c.b16 %v340, %v339
      %vm343 = vcmask 130048
      %v345 = vsel %vm343, %v330, 0
      %347 = vmatpush.bf16.msra.mxu0 0
      %348 = vmatpush.bf16.msra.mxu0 0
      %349 = vmatpush.bf16.msra.mxu0 0
      %350 = vmatpush.bf16.msra.mxu0 0
      %351 = vmatpush.bf16.msra.mxu0 0
      %352 = vmatpush.bf16.msra.mxu0 0
      %353 = vmatpush.bf16.msra.mxu0 0
      %354 = vmatpush.bf16.msra.mxu0 %v341
      %355 = vmatmul.bf16.gmra.mxu0 %v345
      %v356 = vpop.f32.mrf.mxu0
      %v357 = vadd.f32 %v335, %v356
      %v358 = vpop.f32.mrf.mxu0
      %359 = vdwg.mxu0
      %vm360 = vcmp.gt.f32.partialorder %v357, 0.0
      %v361 = vmul.f32 %v357, 0.1
      %v362 = vsel %vm360, %v357, %v361
      %vm363 = vcmask 523264
      %v364 = vsel %vm363, %v362, 0.0
      %365 = vadd.xlane.f32.xlu0 %v364
      %v366 = vpop.xlane.xlu0 %365
      %v367 = vrcp.pop 64.0
      %v368 = vmul.f32 64.0, %v367
      %v369 = vsub.f32 1.0, %v368
      %v370 = vmul.f32 %v367, %v369
      %v371 = vadd.f32 %v367, %v370
      %vm372 = vweird.f32 %v367
      %v373 = vsel %vm372, %v367, %v371
      %v374 = vmul.f32 %v366, %v373
      %v375 = vsub.f32 %v362, %v374
      %v376 = vmul.f32 %v375, %v375
      %v377 = vsel %vm363, %v376, 0.0
      %378 = vadd.xlane.f32.xlu0 %v377
      %v379 = vpop.xlane.xlu0 %378
      %v380 = vmul.f32 %v379, %v373
      %v381 = vadd.f32 %v380, 1e-05
      %v382 = vrsqrt.pop %v381
      %v383 = vmul.f32 %v382, %v381
      %v384 = vmul.f32 %v383, %v382
      %v385 = vmul.f32 0.5, %v384
      %v386 = vsub.f32 1.5, %v385
      %v387 = vmul.f32 %v382, %v386
      %vm388 = vweird.f32 %v381
      %vm389 = vweird.f32 %v382
      %vm390 = vmor %vm388, %vm389
      %v391 = vsel %vm390, %v382, %v387
      %v392 = vmul.f32 %v375, %v391
      %v393 = vpack.c.bf16 %v392, %v392
      %v394 = vld [vmem:[%s3] sm:$0xf]
      %v395 = vld [vmem:[%s3 + $0x4] sm:$0xf]
      %v396 = vld [vmem:[%s3 + $0x8] sm:$0xf]
      %v397 = vld [vmem:[%s3 + $0xc] sm:$0xf]
      %v398 = vld [vmem:[%s3 + $0x10] sm:$0xf]
      %v399 = vld [vmem:[%s3 + $0x14] sm:$0xf]
      %v400 = vld [vmem:[%s3 + $0x18] sm:$0xf]
      %v401 = vld [vmem:[%s3 + $0x1c] sm:$0xf]
      %v402 = vld [vmem:[%s4] sm:$0x1]
      %v404 = vperm.slane %v402, 0
      %v414 = vunpack.c.l.b16 %v394
      %v415 = vunpack.c.l.b16 %v395
      %v416 = vunpack.c.l.b16 %v396
      %v417 = vunpack.c.l.b16 %v397
      %v418 = vunpack.c.l.b16 %v398
      %v419 = vunpack.c.l.b16 %v399
      %v420 = vunpack.c.l.b16 %v400
      %v421 = vunpack.c.l.b16 %v401
      %v422 = vpack.c.b16 %v415, %v414
      %v423 = vpack.c.b16 %v417, %v416
      %v424 = vpack.c.b16 %v419, %v418
      %v425 = vpack.c.b16 %v421, %v420
      %v431 = vsel %vm363, %v393, 0
      %433 = vmatpush.bf16.msra.mxu0 0
      %434 = vmatpush.bf16.msra.mxu0 0
      %435 = vmatpush.bf16.msra.mxu0 0
      %436 = vmatpush.bf16.msra.mxu0 0
      %437 = vmatpush.bf16.msra.mxu0 %v425
      %438 = vmatpush.bf16.msra.mxu0 %v424
      %439 = vmatpush.bf16.msra.mxu0 %v423
      %440 = vmatpush.bf16.msra.mxu0 %v422
      %441 = vmatmul.bf16.gmra.mxu0 %v431
      %v442 = vpop.f32.mrf.mxu0
      %v443 = vadd.f32 %v404, %v442
      %v444 = vpop.f32.mrf.mxu0
      %445 = vdwg.mxu0
      %vm446 = vcmp.gt.f32.partialorder %v443, 0.0
      %v447 = vmul.f32 %v443, 0.1
      %v448 = vsel %vm446, %v443, %v447
      %vm449 = vcmask 261120
      %v450 = vsel %vm449, %v448, 0.0
      %451 = vadd.xlane.f32.xlu0 %v450
      %v452 = vpop.xlane.xlu0 %451
      %v453 = vrcp.pop 32.0
      %v454 = vmul.f32 32.0, %v453
      %v455 = vsub.f32 1.0, %v454
      %v456 = vmul.f32 %v453, %v455
      %v457 = vadd.f32 %v453, %v456
      %vm458 = vweird.f32 %v453
      %v459 = vsel %vm458, %v453, %v457
      %v460 = vmul.f32 %v452, %v459
      %v461 = vsub.f32 %v448, %v460
      %v462 = vmul.f32 %v461, %v461
      %v463 = vsel %vm449, %v462, 0.0
      %464 = vadd.xlane.f32.xlu0 %v463
      %v465 = vpop.xlane.xlu0 %464
      %v466 = vmul.f32 %v465, %v459
      %v467 = vadd.f32 %v466, 1e-05
      %v468 = vrsqrt.pop %v467
      %v469 = vmul.f32 %v468, %v467
      %v470 = vmul.f32 %v469, %v468
      %v471 = vmul.f32 0.5, %v470
      %v472 = vsub.f32 1.5, %v471
      %v473 = vmul.f32 %v468, %v472
      %vm474 = vweird.f32 %v467
      %vm475 = vweird.f32 %v468
      %vm476 = vmor %vm474, %vm475
      %v477 = vsel %vm476, %v468, %v473
      %v478 = vmul.f32 %v461, %v477
      %v479 = vpack.c.bf16 %v478, %v478
      %v480 = vld [vmem:[%s5] sm:$0xf]
      %v481 = vld [vmem:[%s5 + $0x4] sm:$0xf]
      %v482 = vld [vmem:[%s5 + $0x8] sm:$0xf]
      %v483 = vld [vmem:[%s5 + $0xc] sm:$0xf]
      %v484 = vld [vmem:[%s6] sm:$0x1]
      %v486 = vperm.slane %v484, 0
      %v492 = vunpack.c.l.b16 %v480
      %v493 = vunpack.c.l.b16 %v481
      %v494 = vunpack.c.l.b16 %v482
      %v495 = vunpack.c.l.b16 %v483
      %v496 = vpack.c.b16 %v493, %v492
      %v497 = vpack.c.b16 %v495, %v494
      %v501 = vsel %vm449, %v479, 0
      %503 = vmatpush.bf16.msra.mxu0 0
      %504 = vmatpush.bf16.msra.mxu0 0
      %505 = vmatpush.bf16.msra.mxu0 0
      %506 = vmatpush.bf16.msra.mxu0 0
      %507 = vmatpush.bf16.msra.mxu0 0
      %508 = vmatpush.bf16.msra.mxu0 0
      %509 = vmatpush.bf16.msra.mxu0 %v497
      %510 = vmatpush.bf16.msra.mxu0 %v496
      %511 = vmatmul.bf16.gmra.mxu0 %v501
      %v512 = vpop.f32.mrf.mxu0
      %v513 = vadd.f32 %v486, %v512
      %v514 = vpop.f32.mrf.mxu0
      %515 = vdwg.mxu0
      %vm516 = vcmp.gt.f32.partialorder %v513, 0.0
      %v517 = vmul.f32 %v513, 0.1
      %v518 = vsel %vm516, %v513, %v517
      %v519 = vpack.c.bf16 %v518, %v518
      %v520 = vld [vmem:[%s7] sm:$0xf]
      %v521 = vld [vmem:[%s7 + $0x4] sm:$0xf]
      %v522 = vld [vmem:[%s7 + $0x8] sm:$0xf]
      %v523 = vld [vmem:[%s7 + $0xc] sm:$0xf]
      %v524 = vld [vmem:[%s7 + $0x10] sm:$0xf]
      %v525 = vld [vmem:[%s7 + $0x14] sm:$0xf]
      %v526 = vld [vmem:[%s7 + $0x18] sm:$0xf]
      %v527 = vld [vmem:[%s7 + $0x1c] sm:$0xf]
      %v528 = vld [vmem:[%s8] sm:$0x1]
      %v530 = vperm.slane %v528, 0
      %v540 = vunpack.c.l.b16 %v520
      %v541 = vunpack.c.l.b16 %v521
      %v542 = vunpack.c.l.b16 %v522
      %v543 = vunpack.c.l.b16 %v523
      %v544 = vunpack.c.l.b16 %v524
      %v545 = vunpack.c.l.b16 %v525
      %v546 = vunpack.c.l.b16 %v526
      %v547 = vunpack.c.l.b16 %v527
      %v548 = vpack.c.b16 %v541, %v540
      %v549 = vpack.c.b16 %v543, %v542
      %v550 = vpack.c.b16 %v545, %v544
      %v551 = vpack.c.b16 %v547, %v546
      %v557 = vsel %vm363, %v519, 0
      %559 = vmatpush.bf16.msra.mxu0 0
      %560 = vmatpush.bf16.msra.mxu0 0
      %561 = vmatpush.bf16.msra.mxu0 0
      %562 = vmatpush.bf16.msra.mxu0 0
      %563 = vmatpush.bf16.msra.mxu0 %v551
      %564 = vmatpush.bf16.msra.mxu0 %v550
      %565 = vmatpush.bf16.msra.mxu0 %v549
      %566 = vmatpush.bf16.msra.mxu0 %v548
      %567 = vmatmul.bf16.gmra.mxu0 %v557
      %v568 = vpop.f32.mrf.mxu0
      %v569 = vadd.f32 %v530, %v568
      %v570 = vpop.f32.mrf.mxu0
      %571 = vdwg.mxu0
      %vm572 = vcmask 64512
      %573 = vst.msk [vmem:[%s327] sm:$0xff] %vm572, %v569
      %p574 = scmp.lt.s32.totalorder %s20, 1
      %s575 = scalar_select %p574, %s20, 1
      %s576 = smul.addr %s575, 8
      %s577 = scalar_lea.vmem %s9, %s576
      // Predicated region
      $region57: #{up_three_layer_forward.1} parent=55 // pred_check
        %p578 = pneg %p232
      $region58: #{up_three_layer_forward.1} parent=55 // pred_check_branch
        %580 = sbr.rel (%p578) target = $region60
      $region59: #{up_three_layer_forward.1} parent=55 // pred_region
        _
      $region60: #{up_three_layer_forward.1} parent=55 // pred_fallthru
        _
    $region56: #{up_three_layer_forward.1} parent=5 // pred_fallthru
      _
    %p581 = scmp.le.s32.totalorder 2, %s15
    // Predicated region
    $region61: #{up_three_layer_forward.1} parent=5 // pred_check
      %p582 = pneg %p581
    $region62: #{up_three_layer_forward.1} parent=5 // pred_check_branch
      %584 = sbr.rel (%p582) target = $region64
    $region63: #{up_three_layer_forward.1} parent=5 // pred_region
      %s585 = ssub.s32 %s15, 2
      // Predicated region
      $region65: #{up_three_layer_forward.1} parent=63 // pred_check
        %p586 = pneg %p238
      $region66: #{up_three_layer_forward.1} parent=63 // pred_check_branch
        %588 = sbr.rel (%p586) target = $region68
      $region67: #{up_three_layer_forward.1} parent=63 // pred_region
        %p589 = scmp.lt.s32.totalorder %s21, 1
        %s590 = scalar_select %p589, %s21, 1
        %s591 = smul.addr %s590, 8
        %s592 = scalar_lea.vmem %s9, %s591
      $region68: #{up_three_layer_forward.1} parent=63 // pred_fallthru
        _
    $region64: #{up_three_layer_forward.1} parent=5 // pred_fallthru
      _
  $region6: #{up_three_layer_forward.1} parent=0 // loop_footer
    %s19 = sadd.s32 1, %s15
  $region7: #{up_three_layer_forward.1} parent=0 // loop_footer_branch
    %14 = sbr.rel target = $region3
  $region8: #{up_three_layer_forward.1} parent=0 // loop_exit
    _

</llo_original>
